<compile_context>
chip_gen: v6e
topology: v6e:2x2x1
jax: 0.10.0
libtpu: 0.0.40
codegen_flags: <defaults>
</compile_context>

<pallas_src>
import functools

import jax
import jax.numpy as jnp
from jax.experimental import pallas as pl
from jax.experimental.pallas import tpu as pltpu


# ---------------------------------------------------------------------------
# Chip / VMEM sizing helpers
# ---------------------------------------------------------------------------
def _physical_vmem_bytes():
    """Per-core physical VMEM; conservative (v7x-sized) fallback if unknown."""
    try:
        return int(pltpu.get_tpu_info().vmem_capacity_bytes)
    except Exception:
        return 64 * 1024 * 1024


def _compiler_params(dimension_semantics, est_bytes, phys_vmem):
    # Scoped-VMEM limit consistent with the estimated working set, with
    # headroom, never above half of physical VMEM and never below the default.
    limit = int(min(max(2 * est_bytes + (4 << 20), 32 << 20), phys_vmem // 2))
    return pltpu.CompilerParams(
        dimension_semantics=dimension_semantics,
        vmem_limit_bytes=limit,
    )


def _pick_block_d(n, d, itemsize, budget_bytes, block_d=None):
    """Lane-dense feature tile for the fused path; None => use two-pass path.

    Working set per d-tile (fused kernel):
      2x double-buffered x in + 2x z out (native dtype)  -> 4*itemsize / elem
      ~3 live (N, TD) f32 intermediates (x_f32, centered, z_f32) -> 12 / elem
    """
    if block_d is not None:
        return block_d
    per_elem = 4 * itemsize + 3 * 4
    max_td = (budget_bytes // (n * per_elem)) // 128 * 128
    if max_td < 128:
        return None  # even (N, 128) doesn't fit -> two-pass N-tiled path
    if d <= max_td:
        # Whole feature axis fits in one tile.  Split into ~2 lane-dense tiles
        # when possible so both v7x TensorCores get work on the 'parallel'
        # grid axis (harmless ~0.35us extra on single-TC chips).
        if d >= 256:
            half = (((d + 1) // 2) + 127) // 128 * 128
            if half < d:
                return half
        return d
    # d larger than the largest legal tile: multiple-of-128 tiles; Pallas
    # masks the ragged final tile when d % td != 0.
    return max_td


# ---------------------------------------------------------------------------
# Fused single-pass kernel (x fits VMEM along N)
# ---------------------------------------------------------------------------
def _fused_kernel(x_ref, params_ref, z_ref, mv_ref, *, eps):
    x = x_ref[...].astype(jnp.float32)                                # (N, TD)
    mean = jnp.mean(x, axis=0, keepdims=True)                         # (1, TD)
    centered = x - mean                                               # (N, TD)
    var = jnp.mean(centered * centered, axis=0, keepdims=True) + eps  # (1, TD)
    # Fold exp(gamma) * rsqrt(var) into a single per-feature scale (EUP work on
    # a (1, TD) row), then one (N, TD) multiply-add consuming `centered`.
    scale = jnp.exp(params_ref[0:1, :]) * jax.lax.rsqrt(var)          # (1, TD)
    z_ref[...] = (centered * scale + params_ref[1:2, :]).astype(z_ref.dtype)
    mv_ref[0:1, :] = mean
    mv_ref[1:2, :] = var


def _fused_forward(x, params, n, d, td, eps, itemsize, phys_vmem):
    grid = (pl.cdiv(d, td),)
    est = n * td * (4 * itemsize + 3 * 4) + 32 * td
    z, mv = pl.pallas_call(
        functools.partial(_fused_kernel, eps=eps),
        out_shape=(
            jax.ShapeDtypeStruct((n, d), x.dtype),      # z, native dtype
            jax.ShapeDtypeStruct((2, d), jnp.float32),  # [mean; var(+eps)]
        ),
        grid=grid,
        in_specs=[
            pl.BlockSpec((n, td), lambda j: (0, j)),
            pl.BlockSpec((2, td), lambda j: (0, j)),
        ],
        out_specs=(
            pl.BlockSpec((n, td), lambda j: (0, j)),
            pl.BlockSpec((2, td), lambda j: (0, j)),
        ),
        compiler_params=_compiler_params(("parallel",), est, phys_vmem),
    )(x, params)
    return z, mv


# ---------------------------------------------------------------------------
# Two-pass path for large N (former TODO): stats reduction over an
# 'arbitrary' N grid axis, then an elementwise apply pass.
# ---------------------------------------------------------------------------
def _stats_kernel(x_ref, sums_ref, *, tn, n_total):
    @pl.when(pl.program_id(1) == 0)
    def _():
        sums_ref[...] = jnp.zeros_like(sums_ref)
    x = x_ref[...].astype(jnp.float32)                                # (TN, TD)
    if n_total % tn != 0:
        # Mask padding rows of the ragged final N tile.
        row = (jax.lax.broadcasted_iota(jnp.int32, x.shape, 0)
               + pl.program_id(1) * tn)
        x = jnp.where(row < n_total, x, 0.0)
    # TODO(synk): one-pass sum / sum-of-squares trades a little f32 accuracy
    # for a single extra read of x; acceptable for the mem-bound large-N case.
    sums_ref[0:1, :] += jnp.sum(x, axis=0, keepdims=True)
    sums_ref[1:2, :] += jnp.sum(x * x, axis=0, keepdims=True)


def _apply_kernel(x_ref, ss_ref, z_ref):
    z_ref[...] = (x_ref[...].astype(jnp.float32) * ss_ref[0:1, :]
                  + ss_ref[1:2, :]).astype(z_ref.dtype)


def _two_pass_forward(x, params, n, d, eps, itemsize, budget, phys_vmem):
    td = d if d <= 512 else 512                 # lane-dense (or full-extent)
    per_elem = 4 * itemsize + 3 * 4
    tn = budget // (td * per_elem)
    if tn >= n:
        tn = n
    else:
        tn = max(8, (tn // 8) * 8)
    grid = (pl.cdiv(d, td), pl.cdiv(n, tn))

    est1 = tn * td * (2 * itemsize + 2 * 4) + 16 * td
    sums = pl.pallas_call(
        functools.partial(_stats_kernel, tn=tn, n_total=n),
        out_shape=jax.ShapeDtypeStruct((2, d), jnp.float32),
        grid=grid,
        in_specs=[pl.BlockSpec((tn, td), lambda j, i: (i, j))],
        out_specs=pl.BlockSpec((2, td), lambda j, i: (0, j)),
        compiler_params=_compiler_params(("parallel", "arbitrary"),
                                         est1, phys_vmem),
    )(x)

    # Tiny (d,)-sized glue: fold stats + params into scale/shift.
    mean = sums[0] / n
    var = jnp.maximum(sums[1] / n - mean * mean, 0.0) + eps
    scale = jnp.exp(params[0]) * jax.lax.rsqrt(var)
    shift = params[1] - mean * scale
    ss = jnp.stack([scale, shift], axis=0)      # (2, d)

    est2 = tn * td * (4 * itemsize + 4) + 16 * td
    z = pl.pallas_call(
        _apply_kernel,
        out_shape=jax.ShapeDtypeStruct((n, d), x.dtype),
        grid=grid,
        in_specs=[
            pl.BlockSpec((tn, td), lambda j, i: (i, j)),
            pl.BlockSpec((2, td), lambda j, i: (0, j)),
        ],
        out_specs=pl.BlockSpec((tn, td), lambda j, i: (i, j)),
        compiler_params=_compiler_params(("parallel", "parallel"),
                                         est2, phys_vmem),
    )(x, ss)

    mv = jnp.stack([mean, var], axis=0)
    return z, mv


# ---------------------------------------------------------------------------
# Public wrapper
# ---------------------------------------------------------------------------
def batchnorm_flow_forward(x, gamma, beta, *, eps=1e-5, block_d=None,
                           vmem_budget_bytes=None):
    """Training-mode forward. Returns (z, log_det, batch_mean, batch_var)."""
    n, d = x.shape
    phys = _physical_vmem_bytes()
    budget = vmem_budget_bytes if vmem_budget_bytes is not None else phys // 4
    itemsize = jnp.dtype(x.dtype).itemsize

    params = jnp.stack([gamma.astype(jnp.float32),
                        beta.astype(jnp.float32)], axis=0)       # (2, d)

    td = _pick_block_d(n, d, itemsize, budget, block_d)
    if td is not None:
        z, mv = _fused_forward(x, params, n, d, td, eps, itemsize, phys)
    else:
        z, mv = _two_pass_forward(x, params, n, d, eps, itemsize, budget, phys)

    mean, var = mv[0], mv[1]
    # Scalar log-det as (d,)-sized JAX glue: sum(gamma - 0.5*log(batch_var)).
    log_det = jnp.sum(gamma.astype(jnp.float32) - 0.5 * jnp.log(var))
    return z, log_det, mean, var


def update_running_stats(train_mean, train_var, batch_mean, batch_var,
                         momentum=0.95):
    # Identical to the PyTorch momentum update (parameter bookkeeping; note
    # batch_var includes eps, exactly as in the reference module).
    new_mean = momentum * train_mean + (1.0 - momentum) * batch_mean
    new_var = momentum * train_var + (1.0 - momentum) * batch_var
    return new_mean, new_var


def _reference(x, gamma, beta, eps):
    xf = x.astype(jnp.float32)
    m = xf.mean(axis=0)
    v = ((xf - m) ** 2).mean(axis=0) + eps
    z = jnp.exp(gamma) * (xf - m) / jnp.sqrt(v) + beta
    ld = jnp.sum(gamma - 0.5 * jnp.log(v))
    return z, ld, m, v


if __name__ == "__main__":
    eps = 1e-5
    key = jax.random.PRNGKey(0)

    # Case 1: lane-dense tiled fused path (auto-split -> grid=(2,) with TD=128).
    N, D = 8, 256
    x = jax.random.normal(key, (N, D), dtype=jnp.float32)
    gamma = jnp.ones((D,), dtype=jnp.float32)
    beta = jnp.ones((D,), dtype=jnp.float32)
    train_mean = jnp.zeros((D,), dtype=jnp.float32)
    train_var = jnp.ones((D,), dtype=jnp.float32)

    z, log_det, bm, bv = batchnorm_flow_forward(x, gamma, beta, eps=eps)
    train_mean, train_var = update_running_stats(train_mean, train_var, bm, bv)
    jax.block_until_ready((z, log_det, train_mean, train_var))

    z_ref, ld_ref, m_ref, v_ref = _reference(x, gamma, beta, eps)
    assert jnp.allclose(z, z_ref, atol=1e-5, rtol=1e-5)
    assert jnp.allclose(log_det, ld_ref, atol=1e-5, rtol=1e-5)
    assert jnp.allclose(bm, m_ref, atol=1e-5, rtol=1e-5)
    assert jnp.allclose(bv, v_ref, atol=1e-5, rtol=1e-5)

    # Case 2: small d (module-style d=32) -> single full-extent block.
    N2, D2 = 8, 32
    x2 = jax.random.normal(jax.random.PRNGKey(1), (N2, D2), dtype=jnp.float32)
    g2 = jnp.ones((D2,), dtype=jnp.float32)
    b2 = jnp.ones((D2,), dtype=jnp.float32)
    z2, ld2, _, _ = batchnorm_flow_forward(x2, g2, b2, eps=eps)
    jax.block_until_ready((z2, ld2))
    z2_ref, ld2_ref, _, _ = _reference(x2, g2, b2, eps)
    assert jnp.allclose(z2, z2_ref, atol=1e-5, rtol=1e-5)
    assert jnp.allclose(ld2, ld2_ref, atol=1e-5, rtol=1e-5)

    # Case 3: d not a multiple of 128 -> lane-dense tiles + ragged final tile.
    N3, D3 = 16, 300
    x3 = jax.random.normal(jax.random.PRNGKey(2), (N3, D3), dtype=jnp.float32)
    g3 = 0.1 * jax.random.normal(jax.random.PRNGKey(3), (D3,), jnp.float32)
    b3 = jnp.ones((D3,), dtype=jnp.float32)
    z3, ld3, _, _ = batchnorm_flow_forward(x3, g3, b3, eps=eps)
    jax.block_until_ready((z3, ld3))
    z3_ref, ld3_ref, _, _ = _reference(x3, g3, b3, eps)
    assert jnp.allclose(z3, z3_ref, atol=1e-5, rtol=1e-5)
    assert jnp.allclose(ld3, ld3_ref, atol=1e-5, rtol=1e-5)

    # Case 4: force the large-N two-pass path with a tiny VMEM budget.
    N4, D4 = 1024, 256
    x4 = jax.random.normal(jax.random.PRNGKey(4), (N4, D4), dtype=jnp.float32)
    g4 = jnp.ones((D4,), dtype=jnp.float32)
    b4 = jnp.ones((D4,), dtype=jnp.float32)
    z4, ld4, bm4, bv4 = batchnorm_flow_forward(
        x4, g4, b4, eps=eps, vmem_budget_bytes=64 * 1024)
    jax.block_until_ready((z4, ld4))
    z4_ref, ld4_ref, m4_ref, v4_ref = _reference(x4, g4, b4, eps)
    assert jnp.allclose(z4, z4_ref, atol=1e-3, rtol=1e-3)
    assert jnp.allclose(ld4, ld4_ref, atol=5e-3, rtol=1e-4)
    assert jnp.allclose(bm4, m4_ref, atol=1e-4, rtol=1e-4)
    assert jnp.allclose(bv4, v4_ref, atol=1e-4, rtol=1e-4)

    print("KERNEL_OK")
</pallas_src>

<mosaic_0001>
module attributes {stable_mosaic.version = 11 : i64} {
  func.func @_fused_kernel(%arg0: i32, %arg1: memref<8x128xf32, #tpu.memory_space<vmem>>, %arg2: memref<2x128xf32, #tpu.memory_space<vmem>>, %arg3: memref<8x128xf32, #tpu.memory_space<vmem>>, %arg4: memref<2x128xf32, #tpu.memory_space<vmem>>) attributes {dimension_semantics = [#tpu.dimension_semantics<parallel>], iteration_bounds = array<i64: 2>, scalar_prefetch = 0 : i64, scratch_operands = 0 : i64, tpu.core_type = #tpu.core_type<tc>, window_params = [{transform_indices = @transform_0, window_bounds = array<i64: 8, 128>}, {transform_indices = @transform_1, window_bounds = array<i64: 2, 128>}, {transform_indices = @transform_2, window_bounds = array<i64: 8, 128>}, {transform_indices = @transform_3, window_bounds = array<i64: 2, 128>}]} {
    %c0 = arith.constant 0 : index
    %c0_0 = arith.constant 0 : index
    %0 = vector.load %arg1[%c0, %c0_0] : memref<8x128xf32, #tpu.memory_space<vmem>>, vector<8x128xf32>
    %cst = arith.constant dense<0.000000e+00> : vector<128xf32>
    %1 = vector.multi_reduction <add>, %0, %cst [0] : vector<8x128xf32> to vector<128xf32>
    %2 = vector.shape_cast %1 : vector<128xf32> to vector<1x128xf32>
    %cst_1 = arith.constant 8.000000e+00 : f32
    %3 = vector.broadcast %cst_1 : f32 to vector<1x128xf32>
    %4 = arith.divf %2, %3 : vector<1x128xf32>
    %5 = vector.broadcast %4 : vector<1x128xf32> to vector<8x128xf32>
    %6 = arith.subf %0, %5 : vector<8x128xf32>
    %7 = arith.mulf %6, %6 : vector<8x128xf32>
    %cst_2 = arith.constant dense<0.000000e+00> : vector<128xf32>
    %8 = vector.multi_reduction <add>, %7, %cst_2 [0] : vector<8x128xf32> to vector<128xf32>
    %9 = vector.shape_cast %8 : vector<128xf32> to vector<1x128xf32>
    %cst_3 = arith.constant 8.000000e+00 : f32
    %10 = vector.broadcast %cst_3 : f32 to vector<1x128xf32>
    %11 = arith.divf %9, %10 : vector<1x128xf32>
    %cst_4 = arith.constant 9.99999974E-6 : f32
    %12 = vector.broadcast %cst_4 : f32 to vector<1x128xf32>
    %13 = arith.addf %11, %12 : vector<1x128xf32>
    %c0_5 = arith.constant 0 : index
    %c0_6 = arith.constant 0 : index
    %14 = vector.load %arg2[%c0_5, %c0_6] : memref<2x128xf32, #tpu.memory_space<vmem>>, vector<1x128xf32>
    %15 = math.exp %14 : vector<1x128xf32>
    %16 = math.rsqrt %13 : vector<1x128xf32>
    %17 = arith.mulf %15, %16 : vector<1x128xf32>
    %18 = vector.broadcast %17 : vector<1x128xf32> to vector<8x128xf32>
    %19 = arith.mulf %6, %18 : vector<8x128xf32>
    %c1 = arith.constant 1 : index
    %c0_7 = arith.constant 0 : index
    %20 = vector.load %arg2[%c1, %c0_7] : memref<2x128xf32, #tpu.memory_space<vmem>>, vector<1x128xf32>
    %21 = vector.broadcast %20 : vector<1x128xf32> to vector<8x128xf32>
    %22 = arith.addf %19, %21 : vector<8x128xf32>
    %c0_8 = arith.constant 0 : index
    %c0_9 = arith.constant 0 : index
    %23 = vector.load %arg3[%c0_8, %c0_9] : memref<8x128xf32, #tpu.memory_space<vmem>>, vector<8x128xf32>
    tpu.vector_store %arg3[%c0_8, %c0_9], %22 {strides = array<i32>} : memref<8x128xf32, #tpu.memory_space<vmem>>, vector<8x128xf32>,
    %c0_10 = arith.constant 0 : index
    %c0_11 = arith.constant 0 : index
    %24 = vector.load %arg4[%c0_10, %c0_11] : memref<2x128xf32, #tpu.memory_space<vmem>>, vector<1x128xf32>
    tpu.vector_store %arg4[%c0_10, %c0_11], %4 {strides = array<i32>} : memref<2x128xf32, #tpu.memory_space<vmem>>, vector<1x128xf32>,
    %c1_12 = arith.constant 1 : index
    %c0_13 = arith.constant 0 : index
    %25 = vector.load %arg4[%c1_12, %c0_13] : memref<2x128xf32, #tpu.memory_space<vmem>>, vector<1x128xf32>
    tpu.vector_store %arg4[%c1_12, %c0_13], %13 {strides = array<i32>} : memref<2x128xf32, #tpu.memory_space<vmem>>, vector<1x128xf32>,
    return
  }
  func.func @transform_0(%arg0: i32) -> (i32, i32) {
    %c0_i32 = arith.constant 0 : i32
    %c0_i32_0 = arith.constant 0 : i32
    return %c0_i32, %arg0 : i32, i32
  }
  func.func @transform_1(%arg0: i32) -> (i32, i32) {
    %c0_i32 = arith.constant 0 : i32
    %c0_i32_0 = arith.constant 0 : i32
    return %c0_i32, %arg0 : i32, i32
  }
  func.func @transform_2(%arg0: i32) -> (i32, i32) {
    %c0_i32 = arith.constant 0 : i32
    %c0_i32_0 = arith.constant 0 : i32
    return %c0_i32, %arg0 : i32, i32
  }
  func.func @transform_3(%arg0: i32) -> (i32, i32) {
    %c0_i32 = arith.constant 0 : i32
    %c0_i32_0 = arith.constant 0 : i32
    return %c0_i32, %arg0 : i32, i32
  }
}

</mosaic_0001>

<llo_original>
// kernel: tpu_custom_call.1
$region0: #{tpu_custom_call.1}
  #allocation0 [shape = 'u32[]', space=smem, size = 0x4, offset = 0x4, fixed_abs, tag = 'smem constant byte address 0x4 - core index']
  #allocation1 [shape = 'u32[144,128]{1,0:T(1,128)}', space=vmem, size = 0x12000, scoped, tag = 'internal scratch']
  %s0 = inlined_call_operand.hbm [shape: f32[8,256], index: 0, kind: input, shape index: {}]
  %s1 = inlined_call_operand.hbm [shape: f32[2,256], index: 1, kind: input, shape index: {}]
  %s2 = inlined_call_operand.hbm [shape: f32[8,256], index: 2, kind: output, shape index: {0}]
  %s3 = inlined_call_operand.hbm [shape: f32[2,256], index: 3, kind: output, shape index: {1}]
  %4 = xla_tuple %s2, %s3
  %s5 = sld [smem:[#allocation0]]
  $region57: #{tpu_custom_call.1} parent=0
    _
  %s7 = ssub.s32 1, %s5
  %s8 = scalar_select 0, %s7, %s5
  $region1: #{tpu_custom_call.1} parent=0
    #allocation2 [shape = 'u8[8192]{0}', space=vmem, size = 0x2000, scoped, tag = 'input window, operand 0']
    #allocation3 [shape = 's32[2]{0}', space=sflag, size = 0x8, scoped, tag = 'scoped memory for tpu_custom_call.1']
    #allocation4 [shape = 's32[2]{0}', space=sflag, size = 0x8, scoped, tag = 'scoped memory for tpu_custom_call.1']
    #allocation5 [shape = 'u8[2048]{0}', space=vmem, size = 0x800, scoped, tag = 'input window, operand 1']
    #allocation6 [shape = 's32[2]{0}', space=sflag, size = 0x8, scoped, tag = 'scoped memory for tpu_custom_call.1']
    #allocation7 [shape = 'u8[8192]{0}', space=vmem, size = 0x2000, scoped, tag = 'output window, operand 0']
    #allocation8 [shape = 'u8[2048]{0}', space=vmem, size = 0x800, scoped, tag = 'output window, operand 1']
    #allocation9 [shape = 's32[2]{0}', space=sflag, size = 0x8, scoped, tag = 'scoped memory for tpu_custom_call.1']
    %9 = vsyncpa [#allocation3], 0
    %s10 = scalar_lea.sflag [#allocation3], 1
    %11 = vsyncpa %s10, 0
    %12 = vsyncpa [#allocation6], 0
    %s13 = scalar_lea.sflag [#allocation6], 1
    %14 = vsyncpa %s13, 0
    %15 = vsyncpa [#allocation4], 0
    %s16 = scalar_lea.sflag [#allocation4], 1
    %17 = vsyncpa %s16, 0
    %18 = vsyncpa [#allocation9], 0
    %s19 = scalar_lea.sflag [#allocation9], 1
    %20 = vsyncpa %s19, 0
    loop: start=0, step=1, limit=4
    $region2: #{tpu_custom_call.1} parent=1 // loop_pre_header
      _
    $region3: #{tpu_custom_call.1} parent=1 // loop_header
      %s22 = sphi 0, %s26
      %p23 = scmp.ge.s32.totalorder %s22, 4
      %s32 = sphi 0, %s34
      %s35 = sphi 0, %s32
      %s36 = sphi 0, %s35
      %s52 = sphi 0, %s36
      %s58 = sphi 0, %s60
      %s61 = sphi 0, %s58
      %s62 = sphi 0, %s61
      %s78 = sphi 0, %s62
      %s84 = sphi 0, %s86
      %s87 = sphi 0, %s84
      %s88 = sphi 0, %s87
      %s104 = sphi 0, %s88
      %s110 = sphi 0, %s112
      %s113 = sphi 0, %s110
      %s114 = sphi 0, %s113
      %s130 = sphi 0, %s114
    $region4: #{tpu_custom_call.1} parent=1 // loop_header_branch
      %25 = sbr.rel (%p23) target = $region8
    $region5: #{tpu_custom_call.1} parent=1 // loop_body
      %s27 = ssub.s32 %s22, 1
      %s28 = ssub.s32 %s22, 2
      %s29 = sadd.s32 %s22, 1
      %s30 = ssub.s32 %s22, %s29
      %p31 = scmp.eq.s32.totalorder %s30, 0
      %s33 = sadd.s32 %s32, 1
      %s34 = scalar_select %p31, %s32, %s33
      %p37 = pneg %p31
      %p38 = scmp.eq.s32.totalorder %s22, 1
      %p39 = por %p37, %p38
      %p40 = scmp.ne.s32.totalorder %s32, %s35
      %p41 = scmp.eq.s32.totalorder %s22, 0
      %p42 = por %p40, %p41
      %p43 = scmp.ne.s32.totalorder %s32, %s35
      %p44 = scmp.eq.s32.totalorder %s27, 1
      %p45 = por %p43, %p44
      %p46 = scmp.ne.s32.totalorder %s35, %s36
      %p47 = scmp.eq.s32.totalorder %s27, 0
      %p48 = por %p46, %p47
      %p49 = scmp.ne.s32.totalorder %s35, %s36
      %p50 = scmp.eq.s32.totalorder %s28, 1
      %p51 = por %p49, %p50
      %p53 = scmp.ne.s32.totalorder %s36, %s52
      %p54 = scmp.eq.s32.totalorder %s28, 0
      %p55 = por %p53, %p54
      %s56 = ssub.s32 %s22, %s29
      %p57 = scmp.eq.s32.totalorder %s56, 0
      %s59 = sadd.s32 %s58, 1
      %s60 = scalar_select %p57, %s58, %s59
      %p63 = pneg %p57
      %p64 = scmp.eq.s32.totalorder %s22, 1
      %p65 = por %p63, %p64
      %p66 = scmp.ne.s32.totalorder %s58, %s61
      %p67 = scmp.eq.s32.totalorder %s22, 0
      %p68 = por %p66, %p67
      %p69 = scmp.ne.s32.totalorder %s58, %s61
      %p70 = scmp.eq.s32.totalorder %s27, 1
      %p71 = por %p69, %p70
      %p72 = scmp.ne.s32.totalorder %s61, %s62
      %p73 = scmp.eq.s32.totalorder %s27, 0
      %p74 = por %p72, %p73
      %p75 = scmp.ne.s32.totalorder %s61, %s62
      %p76 = scmp.eq.s32.totalorder %s28, 1
      %p77 = por %p75, %p76
      %p79 = scmp.ne.s32.totalorder %s62, %s78
      %p80 = scmp.eq.s32.totalorder %s28, 0
      %p81 = por %p79, %p80
      %s82 = ssub.s32 %s22, %s29
      %p83 = scmp.eq.s32.totalorder %s82, 0
      %s85 = sadd.s32 %s84, 1
      %s86 = scalar_select %p83, %s84, %s85
      %p89 = pneg %p83
      %p90 = scmp.eq.s32.totalorder %s22, 1
      %p91 = por %p89, %p90
      %p92 = scmp.ne.s32.totalorder %s84, %s87
      %p93 = scmp.eq.s32.totalorder %s22, 0
      %p94 = por %p92, %p93
      %p95 = scmp.ne.s32.totalorder %s84, %s87
      %p96 = scmp.eq.s32.totalorder %s27, 1
      %p97 = por %p95, %p96
      %p98 = scmp.ne.s32.totalorder %s87, %s88
      %p99 = scmp.eq.s32.totalorder %s27, 0
      %p100 = por %p98, %p99
      %p101 = scmp.ne.s32.totalorder %s87, %s88
      %p102 = scmp.eq.s32.totalorder %s28, 1
      %p103 = por %p101, %p102
      %p105 = scmp.ne.s32.totalorder %s88, %s104
      %p106 = scmp.eq.s32.totalorder %s28, 0
      %p107 = por %p105, %p106
      %s108 = ssub.s32 %s22, %s29
      %p109 = scmp.eq.s32.totalorder %s108, 0
      %s111 = sadd.s32 %s110, 1
      %s112 = scalar_select %p109, %s110, %s111
      %p115 = pneg %p109
      %p116 = scmp.eq.s32.totalorder %s22, 1
      %p117 = por %p115, %p116
      %p118 = scmp.ne.s32.totalorder %s110, %s113
      %p119 = scmp.eq.s32.totalorder %s22, 0
      %p120 = por %p118, %p119
      %p121 = scmp.ne.s32.totalorder %s110, %s113
      %p122 = scmp.eq.s32.totalorder %s27, 1
      %p123 = por %p121, %p122
      %p124 = scmp.ne.s32.totalorder %s113, %s114
      %p125 = scmp.eq.s32.totalorder %s27, 0
      %p126 = por %p124, %p125
      %p127 = scmp.ne.s32.totalorder %s113, %s114
      %p128 = scmp.eq.s32.totalorder %s28, 1
      %p129 = por %p127, %p128
      %p131 = scmp.ne.s32.totalorder %s114, %s130
      %p132 = scmp.eq.s32.totalorder %s28, 0
      %p133 = por %p131, %p132
      %p134 = scmp.le.s32.totalorder 1, %s22
      %p135 = scmp.lt.s32.totalorder %s22, 3
      %p136 = pnand %p134, %p135
      %p137 = pneg %p136
      // Predicated region
      $region9: #{tpu_custom_call.1} parent=5 // pred_check
        _
      $region10: #{tpu_custom_call.1} parent=5 // pred_check_branch
        %139 = sbr.rel (%p136) target = $region12
      $region11: #{tpu_custom_call.1} parent=5 // pred_region
        %s140 = ssub.s32 %s22, 1
      $region12: #{tpu_custom_call.1} parent=5 // pred_fallthru
        _
      %p141 = scmp.lt.s32.totalorder %s22, 2
      // Predicated region
      $region13: #{tpu_custom_call.1} parent=5 // pred_check
        %p142 = pneg %p141
      $region14: #{tpu_custom_call.1} parent=5 // pred_check_branch
        %144 = sbr.rel (%p142) target = $region16
      $region15: #{tpu_custom_call.1} parent=5 // pred_region
        // Predicated region
        $region17: #{tpu_custom_call.1} parent=15 // pred_check
          %p145 = pneg %p42
        $region18: #{tpu_custom_call.1} parent=15 // pred_check_branch
          %147 = sbr.rel (%p145) target = $region20
        $region19: #{tpu_custom_call.1} parent=15 // pred_region
          %s148 = sand.u32 %s32, 1
          %s149 = scalar_lea.sflag [#allocation3], %s148
          %s150 = sand.u32 %s32, 1
          %s151 = smul.addr %s150, 8
          %s152 = scalar_lea.vmem [#allocation2], %s151
          %s154 = ssub.s32 128, 128
          %155 = vsyncadd %s149, %s154
          %s156 = smul.addr %s22, 128
          %s157 = scalar_lea.hbm %s0, %s156
          %s159 = sshll.u32 %s152, 4
          %s160 = int_to_ptr.vmem [resolvable:$true] %s159
          %162 = dma.hbm_to_vmem [thread:$0]  %s157, 128, %s160, %s149
        $region20: #{tpu_custom_call.1} parent=15 // pred_fallthru
          _
        // Predicated region
        $region21: #{tpu_custom_call.1} parent=15 // pred_check
          %p163 = pneg %p68
        $region22: #{tpu_custom_call.1} parent=15 // pred_check_branch
          %165 = sbr.rel (%p163) target = $region24
        $region23: #{tpu_custom_call.1} parent=15 // pred_region
          %s166 = sand.u32 %s58, 1
          %s167 = scalar_lea.sflag [#allocation6], %s166
          %s168 = sand.u32 %s58, 1
          %s169 = smul.addr %s168, 2
          %s170 = scalar_lea.vmem [#allocation5], %s169
          %s172 = ssub.s32 32, 32
          %173 = vsyncadd %s167, %s172
          %s174 = smul.addr %s22, 32
          %s175 = scalar_lea.hbm %s1, %s174
          %s177 = sshll.u32 %s170, 4
          %s178 = int_to_ptr.vmem [resolvable:$true] %s177
          %180 = dma.hbm_to_vmem [thread:$0]  %s175, 32, %s178, %s167
        $region24: #{tpu_custom_call.1} parent=15 // pred_fallthru
          _
      $region16: #{tpu_custom_call.1} parent=5 // pred_fallthru
        _
      %p181 = scmp.le.s32.totalorder 1, %s22
      %p182 = scmp.lt.s32.totalorder %s22, 3
      %p183 = pnand %p181, %p182
      %p184 = pneg %p183
      // Predicated region
      $region25: #{tpu_custom_call.1} parent=5 // pred_check
        _
      $region26: #{tpu_custom_call.1} parent=5 // pred_check_branch
        %186 = sbr.rel (%p183) target = $region28
      $region27: #{tpu_custom_call.1} parent=5 // pred_region
        %s187 = ssub.s32 %s22, 1
        %s188 = sand.u32 %s35, 1
        %s189 = scalar_lea.sflag [#allocation3], %s188
        %s190 = sand.u32 %s35, 1
        %s191 = smul.addr %s190, 8
        %s192 = scalar_lea.vmem [#allocation2], %s191
        // Predicated region
        $region29: #{tpu_custom_call.1} parent=27 // pred_check
          %p193 = pneg %p48
        $region30: #{tpu_custom_call.1} parent=27 // pred_check_branch
          %195 = sbr.rel (%p193) target = $region32
        $region31: #{tpu_custom_call.1} parent=27 // pred_region
          %196 = dma.done %s189, 128
        $region32: #{tpu_custom_call.1} parent=27 // pred_fallthru
          _
        %s197 = sand.u32 %s61, 1
        %s198 = scalar_lea.sflag [#allocation6], %s197
        %s199 = sand.u32 %s61, 1
        %s200 = smul.addr %s199, 2
        %s201 = scalar_lea.vmem [#allocation5], %s200
        // Predicated region
        $region33: #{tpu_custom_call.1} parent=27 // pred_check
          %p202 = pneg %p74
        $region34: #{tpu_custom_call.1} parent=27 // pred_check_branch
          %204 = sbr.rel (%p202) target = $region36
        $region35: #{tpu_custom_call.1} parent=27 // pred_region
          %205 = dma.done %s198, 32
        $region36: #{tpu_custom_call.1} parent=27 // pred_fallthru
          _
        %s206 = sand.u32 %s35, 1
        %s207 = scalar_lea.sflag [#allocation3], %s206
        %s208 = sand.u32 %s35, 1
        %s209 = smul.addr %s208, 8
        %s210 = scalar_lea.vmem [#allocation2], %s209
        %p211 = pneg %p48
        %p212 = pneg %p45
        %s213 = sand.u32 %s61, 1
        %s214 = scalar_lea.sflag [#allocation6], %s213
        %s215 = sand.u32 %s61, 1
        %s216 = smul.addr %s215, 2
        %s217 = scalar_lea.vmem [#allocation5], %s216
        %p218 = pneg %p74
        %p219 = pneg %p71
        %p220 = pneg %p100
        %p221 = pneg %p97
        %s222 = sand.u32 %s87, 1
        %s223 = scalar_lea.sflag [#allocation4], %s222
        %s224 = sand.u32 %s87, 1
        %s225 = smul.addr %s224, 8
        %s226 = scalar_lea.vmem [#allocation7], %s225
        %p227 = pneg %p126
        %p228 = pneg %p123
        %s229 = sand.u32 %s113, 1
        %s230 = scalar_lea.sflag [#allocation9], %s229
        %s231 = sand.u32 %s113, 1
        %s232 = smul.addr %s231, 2
        %s233 = scalar_lea.vmem [#allocation8], %s232
        %v234 = vld [vmem:[%s192] sm:$0xff]
        %v235 = vrot.slane %v234, 4
        %v236 = vadd.f32 %v234, %v235
        %v237 = vrot.slane %v236, 2
        %v238 = vadd.f32 %v236, %v237
        %v239 = vrot.slane %v238, 1
        %v240 = vadd.f32 %v238, %v239
        %v241 = vrcp.pop 8.0
        %v242 = vmul.f32 %v240, %v241
        %v243 = vsub.f32 %v234, %v242
        %v244 = vmul.f32 %v243, %v243
        %v245 = vrot.slane %v244, 4
        %v246 = vadd.f32 %v244, %v245
        %v247 = vrot.slane %v246, 2
        %v248 = vadd.f32 %v246, %v247
        %v249 = vrot.slane %v248, 1
        %v250 = vadd.f32 %v248, %v249
        %v251 = vmul.f32 %v250, %v241
        %v252 = vadd.f32 %v251, 1e-05
        %v253 = vld [vmem:[%s201] sm:$0x1]
        %v254 = vmul.f32 %v253, 1.442695
        %v255 = vpow.pop %v254
        %v256 = vrsqrt.pop %v252
        %v257 = vmul.f32 %v255, %v256
        %v258 = vlaneseq
        %v259 = vshrl.u32 %v258, 7
        %v260 = vsub.s32 0, %v259
        %v261 = vrot.slane %v257, %v260
        %v262 = vmul.f32 %v243, %v261
        %v263 = vld [vmem:[%s201 + $0x1] sm:$0x1]
        %v264 = vlaneseq
        %v265 = vshrl.u32 %v264, 7
        %v266 = vsub.s32 0, %v265
        %v267 = vrot.slane %v263, %v266
        %v268 = vadd.f32 %v262, %v267
        %269 = vst [vmem:[%s226] sm:$0xff] %v268
        %270 = vst [vmem:[%s233] sm:$0x1] %v242
        %271 = vst [vmem:[%s233 + $0x1] sm:$0x1] %v252
        %s272 = sand.u32 %s87, 1
        %s273 = scalar_lea.sflag [#allocation4], %s272
        %s274 = sand.u32 %s87, 1
        %s275 = smul.addr %s274, 8
        %s276 = scalar_lea.vmem [#allocation7], %s275
        %s277 = sand.u32 %s113, 1
        %s278 = scalar_lea.sflag [#allocation9], %s277
        %s279 = sand.u32 %s113, 1
        %s280 = smul.addr %s279, 2
        %s281 = scalar_lea.vmem [#allocation8], %s280
        // Predicated region
        $region37: #{tpu_custom_call.1} parent=27 // pred_check
          %p282 = pneg %p97
        $region38: #{tpu_custom_call.1} parent=27 // pred_check_branch
          %284 = sbr.rel (%p282) target = $region40
        $region39: #{tpu_custom_call.1} parent=27 // pred_region
          %s286 = ssub.s32 128, 128
          %287 = vsyncadd %s273, %s286
          %s288 = smul.addr %s27, 128
          %s289 = scalar_lea.hbm %s2, %s288
          %s291 = sshll.u32 %s276, 4
          %s292 = int_to_ptr.vmem [resolvable:$true] %s291
          %294 = dma.vmem_to_hbm [thread:$0]  %s292, 128, %s289, %s273
        $region40: #{tpu_custom_call.1} parent=27 // pred_fallthru
          _
        // Predicated region
        $region41: #{tpu_custom_call.1} parent=27 // pred_check
          %p295 = pneg %p123
        $region42: #{tpu_custom_call.1} parent=27 // pred_check_branch
          %297 = sbr.rel (%p295) target = $region44
        $region43: #{tpu_custom_call.1} parent=27 // pred_region
          %s299 = ssub.s32 32, 32
          %300 = vsyncadd %s278, %s299
          %s301 = smul.addr %s27, 32
          %s302 = scalar_lea.hbm %s3, %s301
          %s304 = sshll.u32 %s281, 4
          %s305 = int_to_ptr.vmem [resolvable:$true] %s304
          %307 = dma.vmem_to_hbm [thread:$0]  %s305, 32, %s302, %s278
        $region44: #{tpu_custom_call.1} parent=27 // pred_fallthru
          _
      $region28: #{tpu_custom_call.1} parent=5 // pred_fallthru
        _
      %p308 = scmp.le.s32.totalorder 2, %s22
      // Predicated region
      $region45: #{tpu_custom_call.1} parent=5 // pred_check
        %p309 = pneg %p308
      $region46: #{tpu_custom_call.1} parent=5 // pred_check_branch
        %311 = sbr.rel (%p309) target = $region48
      $region47: #{tpu_custom_call.1} parent=5 // pred_region
        %s312 = ssub.s32 %s22, 2
        // Predicated region
        $region49: #{tpu_custom_call.1} parent=47 // pred_check
          %p313 = pneg %p103
        $region50: #{tpu_custom_call.1} parent=47 // pred_check_branch
          %315 = sbr.rel (%p313) target = $region52
        $region51: #{tpu_custom_call.1} parent=47 // pred_region
          %s316 = sand.u32 %s88, 1
          %s317 = scalar_lea.sflag [#allocation4], %s316
          %s318 = sand.u32 %s88, 1
          %s319 = smul.addr %s318, 8
          %s320 = scalar_lea.vmem [#allocation7], %s319
          %321 = dma.done %s317, 128
        $region52: #{tpu_custom_call.1} parent=47 // pred_fallthru
          _
        // Predicated region
        $region53: #{tpu_custom_call.1} parent=47 // pred_check
          %p322 = pneg %p129
        $region54: #{tpu_custom_call.1} parent=47 // pred_check_branch
          %324 = sbr.rel (%p322) target = $region56
        $region55: #{tpu_custom_call.1} parent=47 // pred_region
          %s325 = sand.u32 %s114, 1
          %s326 = scalar_lea.sflag [#allocation9], %s325
          %s327 = sand.u32 %s114, 1
          %s328 = smul.addr %s327, 2
          %s329 = scalar_lea.vmem [#allocation8], %s328
          %330 = dma.done %s326, 32
        $region56: #{tpu_custom_call.1} parent=47 // pred_fallthru
          _
      $region48: #{tpu_custom_call.1} parent=5 // pred_fallthru
        _
    $region6: #{tpu_custom_call.1} parent=1 // loop_footer
      %s26 = sadd.s32 1, %s22
    $region7: #{tpu_custom_call.1} parent=1 // loop_footer_branch
      %21 = sbr.rel target = $region3
    $region8: #{tpu_custom_call.1} parent=1 // loop_exit
      _
    %331 = vsyncpa [#allocation3], 1
    %s332 = scalar_lea.sflag [#allocation3], 1
    %333 = vsyncpa %s332, 1
    %334 = vsyncpa [#allocation6], 1
    %s335 = scalar_lea.sflag [#allocation6], 1
    %336 = vsyncpa %s335, 1
    %337 = vsyncpa [#allocation4], 1
    %s338 = scalar_lea.sflag [#allocation4], 1
    %339 = vsyncpa %s338, 1
    %340 = vsyncpa [#allocation9], 1
    %s341 = scalar_lea.sflag [#allocation9], 1
    %342 = vsyncpa %s341, 1

</llo_original>
